<compile_context>
chip_gen: v7x
topology: tpu7x:2x2x1
jax: 0.10.0
libtpu: 0.0.40
codegen_flags: <defaults>
</compile_context>

<pallas_src>
import jax
import jax.numpy as jnp
from jax import lax
from jax.experimental import pallas as pl
from jax.experimental.pallas import tpu as pltpu

_MiB = 1 << 20
_LANE = 128


def _domain_norm_kernel(x_ref, s_ref, b_ref, o_ref):
    # x_ref: (BN, C, TILE) block; s_ref/b_ref: (1, C, 128) lane-broadcast f32 params.
    x = x_ref[...].astype(jnp.float32)
    sq_sum = jnp.sum(x * x, axis=1, keepdims=True)        # (BN, 1, TILE), f32 accumulation
    inv = lax.rsqrt(jnp.maximum(sq_sum, 1e-5))            # clamp-before-(r)sqrt == torch clamp+sqrt+div
    s = s_ref[...][:, :, :1]                              # (1, C, 1): identical across lanes
    b = b_ref[...][:, :, :1]
    o_ref[...] = ((x * inv) * s + b).astype(o_ref.dtype)


def _physical_vmem_bytes():
    """Best-effort per-TensorCore VMEM capacity in bytes (conservative fallback)."""
    try:
        kind = jax.devices()[0].device_kind.lower()
    except Exception:
        kind = ""
    if "7" in kind:                                   # v7x: 64 MiB per TensorCore
        return 64 * _MiB
    if any(v in kind for v in ("v4", "v5", "v6")):    # v4/v5e/v6e: 128 MiB
        return 128 * _MiB
    return 64 * _MiB                                  # unknown: assume the small one


def domain_norm_2d(x, scale, bias):
    """x: (N, C, H, W); scale/bias: (1, C, 1, 1). Returns (N, C, H, W)."""
    N, C, H, W = x.shape
    HW = H * W
    dtype = x.dtype
    dtype_bytes = jnp.dtype(dtype).itemsize

    # ---- lane-dense spatial axis -------------------------------------------
    HW_pad = -(-HW // _LANE) * _LANE
    xr = x.reshape(N, C, HW)
    if HW_pad != HW:
        xr = jnp.pad(xr, ((0, 0), (0, 0), (0, HW_pad - HW)))

    # scale/bias: f32, lane-dense, resident across the whole grid.
    s = jnp.broadcast_to(scale.reshape(1, C, 1).astype(jnp.float32), (1, C, _LANE))
    b = jnp.broadcast_to(bias.reshape(1, C, 1).astype(jnp.float32), (1, C, _LANE))

    # ---- pick the biggest block that fits the VMEM budget -------------------
    sublane_pack = {4: 8, 2: 16, 1: 32}.get(dtype_bytes, 8)
    c_pad = -(-C // sublane_pack) * sublane_pack

    phys_vmem = _physical_vmem_bytes()
    vmem_limit = min(phys_vmem - 16 * _MiB, 96 * _MiB)   # 48 MiB on v7x, 96 MiB on v5e/v6e
    data_budget = vmem_limit // 2                        # in + out, each double-buffered

    def _pipeline_bytes(bn, tile):
        return 4 * bn * c_pad * tile * dtype_bytes       # 2 bufs x (in tile + out tile)

    m = HW_pad // _LANE
    tile_hw = _LANE
    for d in range(m, 0, -1):                            # largest lane-dense divisor that fits
        if m % d == 0 and _pipeline_bytes(1, d * _LANE) <= data_budget:
            tile_hw = d * _LANE
            break
    bn = 1
    for cand in range(N, 0, -1):                         # then grow the batch factor
        if N % cand == 0 and _pipeline_bytes(cand, tile_hw) <= data_budget:
            bn = cand
            break

    # Keep >= 2 grid steps when the data allows so v7x's two TensorCores both
    # get work (neutral on v5e/v6e).
    if (N // bn) * (HW_pad // tile_hw) < 2:
        if N >= 2:
            for cand in range(N // 2, 0, -1):
                if N % cand == 0:
                    bn = cand
                    break
        elif m >= 2:
            for d in range(m // 2, 0, -1):
                if m % d == 0:
                    tile_hw = d * _LANE
                    break

    grid_n = N // bn
    grid_hw = HW_pad // tile_hw

    # Larger axis leading (megacore split on v7x); both axes are independent.
    if grid_n >= grid_hw:
        grid = (grid_n, grid_hw)
        x_map = lambda i, j: (i, 0, j)
        p_map = lambda i, j: (0, 0, 0)
    else:
        grid = (grid_hw, grid_n)
        x_map = lambda i, j: (j, 0, i)
        p_map = lambda i, j: (0, 0, 0)

    out = pl.pallas_call(
        _domain_norm_kernel,
        out_shape=jax.ShapeDtypeStruct((N, C, HW_pad), dtype),
        grid_spec=pl.GridSpec(
            grid=grid,
            in_specs=[
                pl.BlockSpec((bn, C, tile_hw), x_map),
                pl.BlockSpec((1, C, _LANE), p_map),
                pl.BlockSpec((1, C, _LANE), p_map),
            ],
            out_specs=pl.BlockSpec((bn, C, tile_hw), x_map),
        ),
        compiler_params=pltpu.CompilerParams(
            dimension_semantics=("parallel", "parallel"),
            vmem_limit_bytes=int(vmem_limit),
        ),
    )(xr, s, b)

    if HW_pad != HW:
        out = out[:, :, :HW]
    return out.reshape(N, C, H, W)


def _reference(x, scale, bias):
    sq_sum = jnp.sum(x * x, axis=1, keepdims=True)
    denom = jnp.sqrt(jnp.maximum(sq_sum, 1e-5))
    return x / denom * scale + bias


if __name__ == "__main__":
    key = jax.random.PRNGKey(0)
    kx, ks, kb = jax.random.split(key, 3)

    N, C, H, W = 2, 4, 16, 16
    x = jax.random.normal(kx, (N, C, H, W), dtype=jnp.float32)

    # Deterministic analogues of torch.normal(1,1,(1,C,1,1)) and torch.normal(0,1,(1,C,1,1)).
    scale = 1.0 + jax.random.normal(ks, (1, C, 1, 1), dtype=jnp.float32)
    bias = jax.random.normal(kb, (1, C, 1, 1), dtype=jnp.float32)

    y = jax.block_until_ready(domain_norm_2d(x, scale, bias))
    y_ref = _reference(x, scale, bias)

    assert y.shape == (N, C, H, W)
    assert jnp.allclose(y, y_ref, atol=1e-5, rtol=1e-5), "mismatch vs reference"

    print("KERNEL_OK")
</pallas_src>

<mosaic_0001>
module attributes {stable_mosaic.version = 11 : i64} {
  func.func @_domain_norm_kernel(%arg0: i32, %arg1: i32, %arg2: memref<1x4x256xf32, #tpu.memory_space<vmem>>, %arg3: memref<1x4x128xf32, #tpu.memory_space<vmem>>, %arg4: memref<1x4x128xf32, #tpu.memory_space<vmem>>, %arg5: memref<1x4x256xf32, #tpu.memory_space<vmem>>) attributes {dimension_semantics = [#tpu.dimension_semantics<parallel>, #tpu.dimension_semantics<parallel>], iteration_bounds = array<i64: 2, 1>, scalar_prefetch = 0 : i64, scratch_operands = 0 : i64, tpu.core_type = #tpu.core_type<tc>, window_params = [{transform_indices = @transform_0, window_bounds = array<i64: 1, 4, 256>}, {pipeline_mode = #tpu.pipeline_mode<synchronous>, transform_indices = @transform_1, window_bounds = array<i64: 1, 4, 128>}, {pipeline_mode = #tpu.pipeline_mode<synchronous>, transform_indices = @transform_2, window_bounds = array<i64: 1, 4, 128>}, {transform_indices = @transform_3, window_bounds = array<i64: 1, 4, 256>}]} {
    %c0 = arith.constant 0 : index
    %c0_0 = arith.constant 0 : index
    %c0_1 = arith.constant 0 : index
    %0 = vector.load %arg2[%c0, %c0_0, %c0_1] : memref<1x4x256xf32, #tpu.memory_space<vmem>>, vector<1x4x256xf32>
    %1 = arith.mulf %0, %0 : vector<1x4x256xf32>
    %cst = arith.constant dense<0.000000e+00> : vector<1x256xf32>
    %2 = vector.multi_reduction <add>, %1, %cst [1] : vector<1x4x256xf32> to vector<1x256xf32>
    %3 = vector.shape_cast %2 : vector<1x256xf32> to vector<1x1x256xf32>
    %cst_2 = arith.constant 9.99999974E-6 : f32
    %4 = vector.broadcast %cst_2 : f32 to vector<1x1x256xf32>
    %5 = arith.maximumf %3, %4 : vector<1x1x256xf32>
    %6 = math.rsqrt %5 : vector<1x1x256xf32>
    %c0_3 = arith.constant 0 : index
    %c0_4 = arith.constant 0 : index
    %c0_5 = arith.constant 0 : index
    %7 = vector.load %arg3[%c0_3, %c0_4, %c0_5] : memref<1x4x128xf32, #tpu.memory_space<vmem>>, vector<1x4x128xf32>
    %8 = vector.extract_strided_slice %7 {offsets = [0, 0, 0], sizes = [1, 4, 1], strides = [1, 1, 1]} : vector<1x4x128xf32> to vector<1x4x1xf32>
    %c0_6 = arith.constant 0 : index
    %c0_7 = arith.constant 0 : index
    %c0_8 = arith.constant 0 : index
    %9 = vector.load %arg4[%c0_6, %c0_7, %c0_8] : memref<1x4x128xf32, #tpu.memory_space<vmem>>, vector<1x4x128xf32>
    %10 = vector.extract_strided_slice %9 {offsets = [0, 0, 0], sizes = [1, 4, 1], strides = [1, 1, 1]} : vector<1x4x128xf32> to vector<1x4x1xf32>
    %11 = vector.broadcast %6 : vector<1x1x256xf32> to vector<1x4x256xf32>
    %12 = arith.mulf %0, %11 : vector<1x4x256xf32>
    %13 = vector.broadcast %8 : vector<1x4x1xf32> to vector<1x4x256xf32>
    %14 = arith.mulf %12, %13 : vector<1x4x256xf32>
    %15 = vector.broadcast %10 : vector<1x4x1xf32> to vector<1x4x256xf32>
    %16 = arith.addf %14, %15 : vector<1x4x256xf32>
    %c0_9 = arith.constant 0 : index
    %c0_10 = arith.constant 0 : index
    %c0_11 = arith.constant 0 : index
    %17 = vector.load %arg5[%c0_9, %c0_10, %c0_11] : memref<1x4x256xf32, #tpu.memory_space<vmem>>, vector<1x4x256xf32>
    tpu.vector_store %arg5[%c0_9, %c0_10, %c0_11], %16 {strides = array<i32>} : memref<1x4x256xf32, #tpu.memory_space<vmem>>, vector<1x4x256xf32>,
    return
  }
  func.func @transform_0(%arg0: i32, %arg1: i32) -> (i32, i32, i32) {
    %c0_i32 = arith.constant 0 : i32
    %c0_i32_0 = arith.constant 0 : i32
    return %arg0, %c0_i32, %arg1 : i32, i32, i32
  }
  func.func @transform_1(%arg0: i32, %arg1: i32) -> (i32, i32, i32) {
    %c0_i32 = arith.constant 0 : i32
    %c0_i32_0 = arith.constant 0 : i32
    %c0_i32_1 = arith.constant 0 : i32
    %c0_i32_2 = arith.constant 0 : i32
    return %c0_i32, %c0_i32_0, %c0_i32_1 : i32, i32, i32
  }
  func.func @transform_2(%arg0: i32, %arg1: i32) -> (i32, i32, i32) {
    %c0_i32 = arith.constant 0 : i32
    %c0_i32_0 = arith.constant 0 : i32
    %c0_i32_1 = arith.constant 0 : i32
    %c0_i32_2 = arith.constant 0 : i32
    return %c0_i32, %c0_i32_0, %c0_i32_1 : i32, i32, i32
  }
  func.func @transform_3(%arg0: i32, %arg1: i32) -> (i32, i32, i32) {
    %c0_i32 = arith.constant 0 : i32
    %c0_i32_0 = arith.constant 0 : i32
    return %arg0, %c0_i32, %arg1 : i32, i32, i32
  }
}

</mosaic_0001>

<llo_original>
// kernel: tpu_custom_call.1
$region0: #{tpu_custom_call.1}
  #allocation0 [shape = 'u32[]', space=smem, size = 0x4, offset = 0x4, fixed_abs, tag = 'smem constant byte address 0x4 - core index']
  #allocation1 [shape = 'u32[144,128]{1,0:T(1,128)}', space=vmem, size = 0x12000, scoped, tag = 'internal scratch']
  %s0 = inlined_call_operand.hbm [shape: f32[2,4,256], index: 0, kind: input, shape index: {}]
  %s1 = inlined_call_operand.hbm [shape: f32[1,4,128], index: 1, kind: input, shape index: {}]
  %s2 = inlined_call_operand.vmem [shape: f32[1,4,128], index: 2, kind: input, shape index: {}]
  %s3 = inlined_call_operand.hbm [shape: f32[2,4,256], index: 3, kind: output, shape index: {}]
  %s4 = sld [smem:[#allocation0]]
  $region53: #{tpu_custom_call.1} parent=0
    _
  %s6 = ssub.s32 1, %s4
  %s7 = scalar_select 0, %s6, %s4
  $region1: #{tpu_custom_call.1} parent=0
    #allocation2 [shape = 'u8[8192]{0}', space=vmem, size = 0x2000, scoped, tag = 'input window, operand 0']
    #allocation3 [shape = 's32[2]{0}', space=sflag, size = 0x8, scoped, tag = 'scoped memory for tpu_custom_call.1']
    #allocation4 [shape = 's32[2]{0}', space=sflag, size = 0x8, scoped, tag = 'scoped memory for tpu_custom_call.1']
    #allocation5 [shape = 'u8[2048]{0}', space=vmem, size = 0x800, scoped, tag = 'input window, operand 1, single buffered']
    #allocation6 [shape = 's32[1]{0}', space=sflag, size = 0x4, scoped, tag = 'scoped memory for tpu_custom_call.1']
    #allocation7 [shape = 'u8[8192]{0}', space=vmem, size = 0x2000, scoped, tag = 'output window, operand 0']
    %8 = vsyncpa [#allocation3], 0
    %s9 = scalar_lea.sflag [#allocation3], 1
    %10 = vsyncpa %s9, 0
    %11 = vsyncpa [#allocation6], 0
    %12 = vsyncpa [#allocation4], 0
    %s13 = scalar_lea.sflag [#allocation4], 1
    %14 = vsyncpa %s13, 0
    loop: start=0, step=1, limit=4
    $region2: #{tpu_custom_call.1} parent=1 // loop_pre_header
      _
    $region3: #{tpu_custom_call.1} parent=1 // loop_header
      %s16 = sphi 0, %s20
      %p17 = scmp.ge.s32.totalorder %s16, 4
      %s23 = sphi 0, %s35
      %s24 = sphi 0, %s31
      %s25 = sphi 0, %s23
      %s26 = sphi 0, %s24
      %s27 = sphi 0, %s25
      %s28 = sphi 0, %s26
      %s40 = sphi 0, %s42
      %s43 = sphi 0, %s40
      %s44 = sphi 0, %s43
      %s60 = sphi 0, %s44
      %s64 = sphi 0, %s64
      %s66 = sphi 0, %s64
      %s67 = sphi 0, %s66
      %s81 = sphi 0, %s67
      %s85 = sphi 0, %s85
      %s87 = sphi 0, %s85
      %s88 = sphi 0, %s87
      %s102 = sphi 0, %s88
      %s110 = sphi 0, %s112
      %s113 = sphi 0, %s110
      %s114 = sphi 0, %s113
      %s130 = sphi 0, %s114
    $region4: #{tpu_custom_call.1} parent=1 // loop_header_branch
      %19 = sbr.rel (%p17) target = $region8
    $region5: #{tpu_custom_call.1} parent=1 // loop_body
      %s21 = ssub.s32 %s16, 1
      %s22 = ssub.s32 %s16, 2
      %s29 = sadd.s32 1, %s24
      %p30 = scmp.ge.s32.totalorder %s29, 1
      %s31 = scalar_select %p30, 0, %s29
      %s32 = sadd.s32 1, %s23
      %s33 = scalar_select %p30, %s32, %s23
      %p34 = scmp.ge.s32.totalorder %s33, 2
      %s35 = scalar_select %p34, 0, %s33
      %s36 = ssub.s32 %s23, %s35
      %s37 = ssub.s32 %s24, %s31
      %s38 = sor.u32 %s36, %s37
      %p39 = scmp.eq.s32.totalorder %s38, 0
      %s41 = sadd.s32 %s40, 1
      %s42 = scalar_select %p39, %s40, %s41
      %p45 = pneg %p39
      %p46 = scmp.eq.s32.totalorder %s16, 1
      %p47 = por %p45, %p46
      %p48 = scmp.ne.s32.totalorder %s40, %s43
      %p49 = scmp.eq.s32.totalorder %s16, 0
      %p50 = por %p48, %p49
      %p51 = scmp.ne.s32.totalorder %s40, %s43
      %p52 = scmp.eq.s32.totalorder %s21, 1
      %p53 = por %p51, %p52
      %p54 = scmp.ne.s32.totalorder %s43, %s44
      %p55 = scmp.eq.s32.totalorder %s21, 0
      %p56 = por %p54, %p55
      %p57 = scmp.ne.s32.totalorder %s43, %s44
      %p58 = scmp.eq.s32.totalorder %s22, 1
      %p59 = por %p57, %p58
      %p61 = scmp.ne.s32.totalorder %s44, %s60
      %p62 = scmp.eq.s32.totalorder %s22, 0
      %p63 = por %p61, %p62
      %s65 = sadd.s32 %s64, 1
      %p68 = scmp.eq.s32.totalorder %s16, 1
      %p69 = scmp.ne.s32.totalorder %s64, %s66
      %p70 = scmp.eq.s32.totalorder %s16, 0
      %p71 = por %p69, %p70
      %p72 = scmp.ne.s32.totalorder %s64, %s66
      %p73 = scmp.eq.s32.totalorder %s21, 1
      %p74 = por %p72, %p73
      %p75 = scmp.ne.s32.totalorder %s66, %s67
      %p76 = scmp.eq.s32.totalorder %s21, 0
      %p77 = por %p75, %p76
      %p78 = scmp.ne.s32.totalorder %s66, %s67
      %p79 = scmp.eq.s32.totalorder %s22, 1
      %p80 = por %p78, %p79
      %p82 = scmp.ne.s32.totalorder %s67, %s81
      %p83 = scmp.eq.s32.totalorder %s22, 0
      %p84 = por %p82, %p83
      %s86 = sadd.s32 %s85, 1
      %p89 = scmp.eq.s32.totalorder %s16, 1
      %p90 = scmp.ne.s32.totalorder %s85, %s87
      %p91 = scmp.eq.s32.totalorder %s16, 0
      %p92 = por %p90, %p91
      %p93 = scmp.ne.s32.totalorder %s85, %s87
      %p94 = scmp.eq.s32.totalorder %s21, 1
      %p95 = por %p93, %p94
      %p96 = scmp.ne.s32.totalorder %s87, %s88
      %p97 = scmp.eq.s32.totalorder %s21, 0
      %p98 = por %p96, %p97
      %p99 = scmp.ne.s32.totalorder %s87, %s88
      %p100 = scmp.eq.s32.totalorder %s22, 1
      %p101 = por %p99, %p100
      %p103 = scmp.ne.s32.totalorder %s88, %s102
      %p104 = scmp.eq.s32.totalorder %s22, 0
      %p105 = por %p103, %p104
      %s106 = ssub.s32 %s23, %s35
      %s107 = ssub.s32 %s24, %s31
      %s108 = sor.u32 %s106, %s107
      %p109 = scmp.eq.s32.totalorder %s108, 0
      %s111 = sadd.s32 %s110, 1
      %s112 = scalar_select %p109, %s110, %s111
      %p115 = pneg %p109
      %p116 = scmp.eq.s32.totalorder %s16, 1
      %p117 = por %p115, %p116
      %p118 = scmp.ne.s32.totalorder %s110, %s113
      %p119 = scmp.eq.s32.totalorder %s16, 0
      %p120 = por %p118, %p119
      %p121 = scmp.ne.s32.totalorder %s110, %s113
      %p122 = scmp.eq.s32.totalorder %s21, 1
      %p123 = por %p121, %p122
      %p124 = scmp.ne.s32.totalorder %s113, %s114
      %p125 = scmp.eq.s32.totalorder %s21, 0
      %p126 = por %p124, %p125
      %p127 = scmp.ne.s32.totalorder %s113, %s114
      %p128 = scmp.eq.s32.totalorder %s22, 1
      %p129 = por %p127, %p128
      %p131 = scmp.ne.s32.totalorder %s114, %s130
      %p132 = scmp.eq.s32.totalorder %s22, 0
      %p133 = por %p131, %p132
      %p134 = scmp.le.s32.totalorder 1, %s16
      %p135 = scmp.lt.s32.totalorder %s16, 3
      %p136 = pnand %p134, %p135
      %p137 = pneg %p136
      // Predicated region
      $region9: #{tpu_custom_call.1} parent=5 // pred_check
        _
      $region10: #{tpu_custom_call.1} parent=5 // pred_check_branch
        %139 = sbr.rel (%p136) target = $region12
      $region11: #{tpu_custom_call.1} parent=5 // pred_region
        %s140 = ssub.s32 %s16, 1
        // Predicated region
        $region13: #{tpu_custom_call.1} parent=11 // pred_check
          %p141 = pneg %p77
        $region14: #{tpu_custom_call.1} parent=11 // pred_check_branch
          %143 = sbr.rel (%p141) target = $region16
        $region15: #{tpu_custom_call.1} parent=11 // pred_region
          %s145 = ssub.s32 64, 64
          %146 = vsyncadd [#allocation6], %s145
          %s148 = sshll.u32 [#allocation5], 4
          %s149 = int_to_ptr.vmem [resolvable:$true] %s148
          %151 = dma.hbm_to_vmem [thread:$0]  %s1, 64, %s149, [#allocation6]
        $region16: #{tpu_custom_call.1} parent=11 // pred_fallthru
          _
        // Predicated region
        $region17: #{tpu_custom_call.1} parent=11 // pred_check
          %p152 = pneg %p98
        $region18: #{tpu_custom_call.1} parent=11 // pred_check_branch
          %154 = sbr.rel (%p152) target = $region20
        $region19: #{tpu_custom_call.1} parent=11 // pred_region
          _
        $region20: #{tpu_custom_call.1} parent=11 // pred_fallthru
          _
      $region12: #{tpu_custom_call.1} parent=5 // pred_fallthru
        _
      %p155 = scmp.lt.s32.totalorder %s16, 2
      // Predicated region
      $region21: #{tpu_custom_call.1} parent=5 // pred_check
        %p156 = pneg %p155
      $region22: #{tpu_custom_call.1} parent=5 // pred_check_branch
        %158 = sbr.rel (%p156) target = $region24
      $region23: #{tpu_custom_call.1} parent=5 // pred_region
        // Predicated region
        $region25: #{tpu_custom_call.1} parent=23 // pred_check
          %p159 = pneg %p50
        $region26: #{tpu_custom_call.1} parent=23 // pred_check_branch
          %161 = sbr.rel (%p159) target = $region28
        $region27: #{tpu_custom_call.1} parent=23 // pred_region
          %s162 = sand.u32 %s40, 1
          %s163 = scalar_lea.sflag [#allocation3], %s162
          %s164 = sand.u32 %s40, 1
          %s165 = smul.addr %s164, 8
          %s166 = scalar_lea.vmem [#allocation2], %s165
          %s167 = smul.u32 2, %s24
          %s169 = ssub.s32 128, 128
          %170 = vsyncadd %s163, %s169
          %s171 = smul.addr %s23, 2
          %s172 = sadd.s32 %s167, %s171
          %s173 = smul.addr %s172, 64
          %s174 = scalar_lea.hbm %s0, %s173
          %s176 = sshll.u32 %s166, 4
          %s177 = int_to_ptr.vmem [resolvable:$true] %s176
          %179 = dma.hbm_to_vmem [thread:$0]  %s174, 128, %s177, %s163
        $region28: #{tpu_custom_call.1} parent=23 // pred_fallthru
          _
      $region24: #{tpu_custom_call.1} parent=5 // pred_fallthru
        _
      %p180 = scmp.le.s32.totalorder 1, %s16
      %p181 = scmp.lt.s32.totalorder %s16, 3
      %p182 = pnand %p180, %p181
      %p183 = pneg %p182
      // Predicated region
      $region29: #{tpu_custom_call.1} parent=5 // pred_check
        _
      $region30: #{tpu_custom_call.1} parent=5 // pred_check_branch
        %185 = sbr.rel (%p182) target = $region32
      $region31: #{tpu_custom_call.1} parent=5 // pred_region
        %s186 = ssub.s32 %s16, 1
        %s187 = sand.u32 %s43, 1
        %s188 = scalar_lea.sflag [#allocation3], %s187
        %s189 = sand.u32 %s43, 1
        %s190 = smul.addr %s189, 8
        %s191 = scalar_lea.vmem [#allocation2], %s190
        // Predicated region
        $region33: #{tpu_custom_call.1} parent=31 // pred_check
          %p192 = pneg %p56
        $region34: #{tpu_custom_call.1} parent=31 // pred_check_branch
          %194 = sbr.rel (%p192) target = $region36
        $region35: #{tpu_custom_call.1} parent=31 // pred_region
          %195 = dma.done %s188, 128
        $region36: #{tpu_custom_call.1} parent=31 // pred_fallthru
          _
        // Predicated region
        $region37: #{tpu_custom_call.1} parent=31 // pred_check
          %p196 = pneg %p77
        $region38: #{tpu_custom_call.1} parent=31 // pred_check_branch
          %198 = sbr.rel (%p196) target = $region40
        $region39: #{tpu_custom_call.1} parent=31 // pred_region
          %199 = dma.done [#allocation6], 64
        $region40: #{tpu_custom_call.1} parent=31 // pred_fallthru
          _
        %s200 = sand.u32 %s43, 1
        %s201 = scalar_lea.sflag [#allocation3], %s200
        %s202 = sand.u32 %s43, 1
        %s203 = smul.addr %s202, 8
        %s204 = scalar_lea.vmem [#allocation2], %s203
        %p205 = pneg %p56
        %p206 = pneg %p53
        %p207 = pneg %p77
        %p208 = pneg %p74
        %p209 = pneg %p98
        %p210 = pneg %p95
        %p211 = pneg %p126
        %p212 = pneg %p123
        %s213 = sand.u32 %s113, 1
        %s214 = scalar_lea.sflag [#allocation4], %s213
        %s215 = sand.u32 %s113, 1
        %s216 = smul.addr %s215, 8
        %s217 = scalar_lea.vmem [#allocation7], %s216
        %s218 = smul.u32 2, %s26
        %s219 = smul.u32 2, %s26
        %v220 = vld [vmem:[%s191] sm:$0xff]
        %v221 = vmul.f32 %v220, %v220
        %v223 = vcombine.high %v221, %v221
        %vm225 = vcmask 1043456
        %v226 = vsel %vm225, %v221, 0.0
        %v227 = vrot.slane %v226, 4
        %v228 = vadd.f32 %v226, %v227
        %v229 = vrot.slane %v228, 2
        %v230 = vadd.f32 %v228, %v229
        %v231 = vrot.slane %v230, 1
        %v232 = vadd.f32 %v230, %v231
        %v233 = vsel %vm225, %v223, 0.0
        %v234 = vrot.slane %v233, 4
        %v235 = vadd.f32 %v233, %v234
        %v236 = vrot.slane %v235, 2
        %v237 = vadd.f32 %v235, %v236
        %v238 = vrot.slane %v237, 1
        %v239 = vadd.f32 %v237, %v238
        %v240 = vmax.f32 %v232, 1e-05
        %v241 = vmax.f32 %v239, 1e-05
        %v242 = vrsqrt.pop %v240
        %v243 = vrsqrt.pop %v241
        %v244 = vld [vmem:[#allocation5] sm:$0xf]
        %v245 = vld [vmem:[%s2] sm:$0xf]
        %v248 = vcombine.low %v242, %v243
        %v250 = vmul.f32 %v220, %v248
        %252 = vset.pattern.permute.xlu0 0
        %253 = vperm.xlu0 %252, %v244
        %v254 = vpop.permute.xlu0 %253
        %v256 = vunpack.c.l.s4 839922192
        %v257 = vunpack.c.0.s8 %v256
        %v258 = vlaneseq
        %v259 = vshrl.u32 %v258, 7
        %v260 = vsub.s32 %v257, %v259
        %v261 = vrot.slane %v254, %v260
        %v263 = vmul.f32 %v250, %v261
        %265 = vset.pattern.permute.xlu0 0
        %266 = vperm.xlu0 %265, %v245
        %v267 = vpop.permute.xlu0 %266
        %v269 = vunpack.c.l.s4 839922192
        %v270 = vunpack.c.0.s8 %v269
        %v271 = vlaneseq
        %v272 = vshrl.u32 %v271, 7
        %v273 = vsub.s32 %v270, %v272
        %v274 = vrot.slane %v267, %v273
        %v276 = vadd.f32 %v263, %v274
        %277 = vst [vmem:[%s217] sm:$0xff] %v276
        %s278 = sand.u32 %s113, 1
        %s279 = scalar_lea.sflag [#allocation4], %s278
        %s280 = sand.u32 %s113, 1
        %s281 = smul.addr %s280, 8
        %s282 = scalar_lea.vmem [#allocation7], %s281
        // Predicated region
        $region41: #{tpu_custom_call.1} parent=31 // pred_check
          %p283 = pneg %p123
        $region42: #{tpu_custom_call.1} parent=31 // pred_check_branch
          %285 = sbr.rel (%p283) target = $region44
        $region43: #{tpu_custom_call.1} parent=31 // pred_region
          %s286 = smul.u32 2, %s26
          %s288 = ssub.s32 128, 128
          %289 = vsyncadd %s279, %s288
          %s290 = smul.addr %s25, 2
          %s291 = sadd.s32 %s286, %s290
          %s292 = smul.addr %s291, 64
          %s293 = scalar_lea.hbm %s3, %s292
          %s295 = sshll.u32 %s282, 4
          %s296 = int_to_ptr.vmem [resolvable:$true] %s295
          %298 = dma.vmem_to_hbm [thread:$0]  %s296, 128, %s293, %s279
        $region44: #{tpu_custom_call.1} parent=31 // pred_fallthru
          _
      $region32: #{tpu_custom_call.1} parent=5 // pred_fallthru
        _
      %p299 = scmp.le.s32.totalorder 2, %s16
      // Predicated region
      $region45: #{tpu_custom_call.1} parent=5 // pred_check
        %p300 = pneg %p299
      $region46: #{tpu_custom_call.1} parent=5 // pred_check_branch
        %302 = sbr.rel (%p300) target = $region48
      $region47: #{tpu_custom_call.1} parent=5 // pred_region
        %s303 = ssub.s32 %s16, 2
        // Predicated region
        $region49: #{tpu_custom_call.1} parent=47 // pred_check
          %p304 = pneg %p129
        $region50: #{tpu_custom_call.1} parent=47 // pred_check_branch
          %306 = sbr.rel (%p304) target = $region52
        $region51: #{tpu_custom_call.1} parent=47 // pred_region
          %s307 = sand.u32 %s114, 1
          %s308 = scalar_lea.sflag [#allocation4], %s307
          %s309 = sand.u32 %s114, 1
          %s310 = smul.addr %s309, 8
          %s311 = scalar_lea.vmem [#allocation7], %s310
          %312 = dma.done %s308, 128
        $region52: #{tpu_custom_call.1} parent=47 // pred_fallthru
          _
      $region48: #{tpu_custom_call.1} parent=5 // pred_fallthru
        _
    $region6: #{tpu_custom_call.1} parent=1 // loop_footer
      %s20 = sadd.s32 1, %s16
    $region7: #{tpu_custom_call.1} parent=1 // loop_footer_branch
      %15 = sbr.rel target = $region3
    $region8: #{tpu_custom_call.1} parent=1 // loop_exit
      _
    %313 = vsyncpa [#allocation3], 1
    %s314 = scalar_lea.sflag [#allocation3], 1
    %315 = vsyncpa %s314, 1
    %316 = vsyncpa [#allocation6], 1
    %317 = vsyncpa [#allocation4], 1
    %s318 = scalar_lea.sflag [#allocation4], 1
    %319 = vsyncpa %s318, 1

</llo_original>
